<compile_context>
chip_gen: v7x
topology: tpu7x:2x2x1
jax: 0.10.0
libtpu: 0.0.40
codegen_flags: <defaults>
</compile_context>

<pallas_src>
import math

import jax
import jax.numpy as jnp
from jax.experimental import pallas as pl
from jax.experimental.pallas import tpu as pltpu

_MIB = 1024 * 1024


def _layer_scale_kernel(x_ref, gamma_ref, o_ref):
    # x_ref: (TILE_ROWS, TILE_COLS), gamma_ref: (1, TILE_COLS).
    o_ref[...] = x_ref[...] * gamma_ref[...]


def _tpu_generation() -> str:
    try:
        kind = jax.devices()[0].device_kind.lower()
    except Exception:
        return "unknown"
    if "v7" in kind:
        return "v7"
    if "v6" in kind:
        return "v6"
    if "v5e" in kind or "v5 lite" in kind or "v5litepod" in kind:
        return "v5e"
    return "other"


def layer_scale(x: jax.Array, gamma: jax.Array, *, target_tile_bytes: int | None = None) -> jax.Array:
    """out = x * gamma, gamma broadcast over the last axis of x."""
    orig_shape = x.shape
    dim = orig_shape[-1]
    assert gamma.shape == (dim,), f"gamma must be ({dim},), got {gamma.shape}"

    # --- Generation-aware constants -------------------------------------
    gen = _tpu_generation()
    if gen == "v7":
        default_tile_bytes, vmem_cap, two_cores = 6 * _MIB, 48 * _MIB, True
    elif gen == "v6":
        default_tile_bytes, vmem_cap, two_cores = 12 * _MIB, 80 * _MIB, False
    elif gen == "v5e":
        default_tile_bytes, vmem_cap, two_cores = 8 * _MIB, 64 * _MIB, False
    else:  # unknown generation: conservative (fits the smallest VMEM, 1 TC)
        default_tile_bytes, vmem_cap, two_cores = 6 * _MIB, 48 * _MIB, False
    if target_tile_bytes is None:
        target_tile_bytes = default_tile_bytes

    rows = 1
    for s in orig_shape[:-1]:
        rows *= s

    gamma = gamma.astype(x.dtype)
    dtype_bytes = jnp.dtype(x.dtype).itemsize
    # Sublane granularity: 8 rows for 32-bit, 16 for 16-bit, 32 for 8-bit.
    sublane = max(8, 32 // dtype_bytes)

    # --- Lane-dense folding: make the last dim a multiple of 128 ---------
    # Fold f consecutive rows into the last axis (f minimal s.t. f*dim % 128
    # == 0); gamma is tiled f times so the broadcast multiply is unchanged.
    # Rows that don't divide f are padded and the result is sliced back, so
    # there is no masked-store fallback path anymore.
    f = 128 // math.gcd(dim, 128)
    x2d = x.reshape(rows, dim)
    pad_rows = 0
    if f > 1:
        pad_rows = (-rows) % f
        if pad_rows:
            x2d = jnp.pad(x2d, ((0, pad_rows), (0, 0)))
        folded_rows = (rows + pad_rows) // f
        folded_dim = f * dim
        gamma_row = jnp.tile(gamma, f).reshape(1, folded_dim)
    else:
        folded_rows = rows
        folded_dim = dim
        gamma_row = gamma.reshape(1, dim)
    x2d = x2d.reshape(folded_rows, folded_dim)
    # folded_dim is always a multiple of 128 here.

    # --- Column tiling for very wide folded dims -------------------------
    bytes_per_full_row = folded_dim * dtype_bytes
    min_rows = min(folded_rows, sublane)
    if min_rows * bytes_per_full_row > target_tile_bytes and folded_dim > 128:
        tile_cols = (target_tile_bytes // (min_rows * dtype_bytes)) // 128 * 128
        tile_cols = int(max(128, min(tile_cols, folded_dim)))
    else:
        tile_cols = folded_dim

    # --- Row tiling sized by bytes (~target_tile_bytes per block) --------
    bytes_per_row = tile_cols * dtype_bytes
    tile_rows = max(1, target_tile_bytes // bytes_per_row)
    tile_rows = min(tile_rows, folded_rows)
    if tile_rows < folded_rows:
        tile_rows = max(sublane, (tile_rows // sublane) * sublane)
        tile_rows = min(tile_rows, folded_rows)

    num_row_tiles = pl.cdiv(folded_rows, tile_rows)
    num_col_tiles = pl.cdiv(folded_dim, tile_cols)

    # --- v7x only: split rows so both TensorCores get balanced work ------
    if two_cores and num_col_tiles == 1:
        max_row_tiles = pl.cdiv(folded_rows, sublane) if folded_rows > sublane else 1
        desired = max(num_row_tiles, 4)
        if desired % 2:
            desired += 1
        desired = min(desired, max_row_tiles)
        if desired % 2 == 1 and desired > 1:
            desired -= 1
        if desired > num_row_tiles:
            tile_rows = pl.cdiv(folded_rows, desired)
            tile_rows = min(folded_rows, max(sublane, pl.cdiv(tile_rows, sublane) * sublane))
            num_row_tiles = pl.cdiv(folded_rows, tile_rows)

    # --- VMEM budget: double-buffered input + output + resident gamma ----
    tile_bytes = tile_rows * tile_cols * dtype_bytes
    vmem_need = 4 * tile_bytes + 2 * tile_cols * dtype_bytes
    vmem_limit = int(min(max(2 * vmem_need, 32 * _MIB), vmem_cap))
    vmem_limit = int(max(vmem_limit, vmem_need + 2 * _MIB))  # never clamp below need

    cost = pl.CostEstimate(
        flops=rows * dim,
        transcendentals=0,
        bytes_accessed=2 * rows * dim * dtype_bytes + dim * dtype_bytes,
    )

    out2d = pl.pallas_call(
        _layer_scale_kernel,
        out_shape=jax.ShapeDtypeStruct((folded_rows, folded_dim), x.dtype),
        grid_spec=pltpu.PrefetchScalarGridSpec(
            num_scalar_prefetch=0,
            grid=(num_row_tiles, num_col_tiles),
            in_specs=[
                pl.BlockSpec((tile_rows, tile_cols), lambda i, j: (i, j)),
                pl.BlockSpec((1, tile_cols), lambda i, j: (0, j)),
            ],
            out_specs=pl.BlockSpec((tile_rows, tile_cols), lambda i, j: (i, j)),
        ),
        compiler_params=pltpu.CompilerParams(
            dimension_semantics=("parallel", "parallel"),
            vmem_limit_bytes=vmem_limit,
        ),
        cost_estimate=cost,
    )(x2d, gamma_row)

    out = out2d.reshape(folded_rows * f, dim)
    if pad_rows:
        out = out[:rows]
    return out.reshape(orig_shape)


# TODO(synk): the `inplace=True` (x.mul_) variant has no in-place equivalent in
# functional JAX; this implements the out-of-place forward (identical values).


if __name__ == "__main__":
    key = jax.random.PRNGKey(0)
    init_values = 1e-5

    # (batch, seq, dim) consistent with the module's transformer usage.
    batch, seq, dim = 2, 8, 32
    x = jax.random.normal(key, (batch, seq, dim), dtype=jnp.float32)
    # nn.Parameter(init_values * torch.ones(dim))
    gamma = init_values * jnp.ones((dim,), dtype=jnp.float32)
    out = jax.block_until_ready(layer_scale(x, gamma))
    assert jnp.allclose(out, x * gamma, atol=1e-6, rtol=1e-6)

    k1, k2, k3 = jax.random.split(jax.random.PRNGKey(1), 3)

    # Different fold factor (dim=320 -> f=2), rows divisible by f (no padding).
    x2 = jax.random.normal(k1, (2, 12, 320), dtype=jnp.float32)
    gamma2 = init_values * jnp.ones((320,), dtype=jnp.float32)
    out2 = jax.block_until_ready(layer_scale(x2, gamma2))
    assert jnp.allclose(out2, x2 * gamma2, atol=1e-6, rtol=1e-6)

    # Padding path: rows=15 not divisible by fold factor (dim=96 -> f=4).
    x3 = jax.random.normal(k2, (3, 5, 96), dtype=jnp.float32)
    gamma3 = init_values * jnp.ones((96,), dtype=jnp.float32)
    out3 = jax.block_until_ready(layer_scale(x3, gamma3))
    assert jnp.allclose(out3, x3 * gamma3, atol=1e-6, rtol=1e-6)

    # Column-tiling (2D grid) path, forced via a tiny per-block byte target.
    x4 = jax.random.normal(k3, (64, 512), dtype=jnp.float32)
    gamma4 = init_values * jnp.ones((512,), dtype=jnp.float32)
    out4 = jax.block_until_ready(layer_scale(x4, gamma4, target_tile_bytes=8 * 1024))
    assert jnp.allclose(out4, x4 * gamma4, atol=1e-6, rtol=1e-6)

    print("KERNEL_OK")
</pallas_src>

<mosaic_0001>
module attributes {stable_mosaic.version = 11 : i64} {
  func.func @_layer_scale_kernel(%arg0: i32, %arg1: i32, %arg2: memref<4x128xf32, #tpu.memory_space<vmem>>, %arg3: memref<1x128xf32, #tpu.memory_space<vmem>>, %arg4: memref<4x128xf32, #tpu.memory_space<vmem>>) attributes {dimension_semantics = [#tpu.dimension_semantics<parallel>, #tpu.dimension_semantics<parallel>], iteration_bounds = array<i64: 1, 1>, scalar_prefetch = 0 : i64, scratch_operands = 0 : i64, tpu.core_type = #tpu.core_type<tc>, window_params = [{transform_indices = @transform_0, window_bounds = array<i64: 4, 128>}, {transform_indices = @transform_1, window_bounds = array<i64: 1, 128>}, {transform_indices = @transform_2, window_bounds = array<i64: 4, 128>}]} {
    %c0 = arith.constant 0 : index
    %c0_0 = arith.constant 0 : index
    %0 = vector.load %arg2[%c0, %c0_0] : memref<4x128xf32, #tpu.memory_space<vmem>>, vector<4x128xf32>
    %c0_1 = arith.constant 0 : index
    %c0_2 = arith.constant 0 : index
    %1 = vector.load %arg3[%c0_1, %c0_2] : memref<1x128xf32, #tpu.memory_space<vmem>>, vector<1x128xf32>
    %2 = vector.broadcast %1 : vector<1x128xf32> to vector<4x128xf32>
    %3 = arith.mulf %0, %2 : vector<4x128xf32>
    %c0_3 = arith.constant 0 : index
    %c0_4 = arith.constant 0 : index
    %4 = vector.load %arg4[%c0_3, %c0_4] : memref<4x128xf32, #tpu.memory_space<vmem>>, vector<4x128xf32>
    tpu.vector_store %arg4[%c0_3, %c0_4], %3 {strides = array<i32>} : memref<4x128xf32, #tpu.memory_space<vmem>>, vector<4x128xf32>,
    return
  }
  func.func @transform_0(%arg0: i32, %arg1: i32) -> (i32, i32) {
    %c0_i32 = arith.constant 0 : i32
    return %arg0, %arg1 : i32, i32
  }
  func.func @transform_1(%arg0: i32, %arg1: i32) -> (i32, i32) {
    %c0_i32 = arith.constant 0 : i32
    %c0_i32_0 = arith.constant 0 : i32
    return %c0_i32, %arg1 : i32, i32
  }
  func.func @transform_2(%arg0: i32, %arg1: i32) -> (i32, i32) {
    %c0_i32 = arith.constant 0 : i32
    return %arg0, %arg1 : i32, i32
  }
}

</mosaic_0001>

<llo_original>
// kernel: tpu_custom_call.1
$region0: #{tpu_custom_call.1}
  #allocation0 [shape = 'u32[]', space=smem, size = 0x4, offset = 0x4, fixed_abs, tag = 'smem constant byte address 0x4 - core index']
  #allocation1 [shape = 'u32[144,128]{1,0:T(1,128)}', space=vmem, size = 0x12000, scoped, tag = 'internal scratch']
  %s0 = inlined_call_operand.hbm [shape: f32[4,128], index: 0, kind: input, shape index: {}]
  %s1 = inlined_call_operand.vmem [shape: f32[1,128], index: 1, kind: input, shape index: {}]
  %s2 = inlined_call_operand.hbm [shape: f32[4,128], index: 2, kind: output, shape index: {}]
  %s3 = sld [smem:[#allocation0]]
  $region22: #{tpu_custom_call.1} parent=0
    _
  %s5 = ssub.s32 1, %s3
  %s6 = scalar_select 0, %s5, %s3
  $region1: #{tpu_custom_call.1} parent=0
    #allocation2 [shape = 'u8[2048]{0}', space=vmem, size = 0x800, scoped, tag = 'input window, operand 0, single buffered']
    #allocation3 [shape = 's32[1]{0}', space=sflag, size = 0x4, scoped, tag = 'scoped memory for tpu_custom_call.1']
    #allocation4 [shape = 's32[1]{0}', space=sflag, size = 0x4, scoped, tag = 'scoped memory for tpu_custom_call.1']
    #allocation5 [shape = 'u8[2048]{0}', space=vmem, size = 0x800, scoped, tag = 'output window, operand 0, single buffered']
    %7 = vsyncpa [#allocation3], 0
    %8 = vsyncpa [#allocation4], 0
    // Predicated region
    $region2: #{tpu_custom_call.1} parent=1 // pred_check
      _
    $region3: #{tpu_custom_call.1} parent=1 // pred_check_branch
      %10 = sbr.rel (0) target = $region5
    $region4: #{tpu_custom_call.1} parent=1 // pred_region
      %s12 = ssub.s32 64, 64
      %13 = vsyncadd [#allocation3], %s12
      %s15 = sshll.u32 [#allocation2], 4
      %s16 = int_to_ptr.vmem [resolvable:$true] %s15
      %18 = dma.hbm_to_vmem [thread:$0]  %s0, 64, %s16, [#allocation3]
    $region5: #{tpu_custom_call.1} parent=1 // pred_fallthru
      _
    // Predicated region
    $region6: #{tpu_custom_call.1} parent=1 // pred_check
      _
    $region7: #{tpu_custom_call.1} parent=1 // pred_check_branch
      %20 = sbr.rel (0) target = $region9
    $region8: #{tpu_custom_call.1} parent=1 // pred_region
      _
    $region9: #{tpu_custom_call.1} parent=1 // pred_fallthru
      _
    // Predicated region
    $region10: #{tpu_custom_call.1} parent=1 // pred_check
      _
    $region11: #{tpu_custom_call.1} parent=1 // pred_check_branch
      %22 = sbr.rel (0) target = $region13
    $region12: #{tpu_custom_call.1} parent=1 // pred_region
      %23 = dma.done [#allocation3], 64
    $region13: #{tpu_custom_call.1} parent=1 // pred_fallthru
      _
    %v24 = vld [vmem:[#allocation2] sm:$0xf]
    %v25 = vld [vmem:[%s1] sm:$0x1]
    %v27 = vlaneseq
    %v28 = vshrl.u32 %v27, 7
    %v29 = vsub.s32 0, %v28
    %v30 = vrot.slane %v25, %v29
    %v32 = vmul.f32 %v24, %v30
    %33 = vst [vmem:[#allocation5] sm:$0xf] %v32
    // Predicated region
    $region14: #{tpu_custom_call.1} parent=1 // pred_check
      _
    $region15: #{tpu_custom_call.1} parent=1 // pred_check_branch
      %35 = sbr.rel (0) target = $region17
    $region16: #{tpu_custom_call.1} parent=1 // pred_region
      %s37 = ssub.s32 64, 64
      %38 = vsyncadd [#allocation4], %s37
      %s40 = sshll.u32 [#allocation5], 4
      %s41 = int_to_ptr.vmem [resolvable:$true] %s40
      %43 = dma.vmem_to_hbm [thread:$0]  %s41, 64, %s2, [#allocation4]
    $region17: #{tpu_custom_call.1} parent=1 // pred_fallthru
      _
    // Predicated region
    $region18: #{tpu_custom_call.1} parent=1 // pred_check
      _
    $region19: #{tpu_custom_call.1} parent=1 // pred_check_branch
      %45 = sbr.rel (0) target = $region21
    $region20: #{tpu_custom_call.1} parent=1 // pred_region
      %46 = dma.done [#allocation4], 64
    $region21: #{tpu_custom_call.1} parent=1 // pred_fallthru
      _
    %47 = vsyncpa [#allocation3], 1
    %48 = vsyncpa [#allocation4], 1

</llo_original>
